<compile_context>
chip_gen: v7x
topology: tpu7x:2x2x1
jax: 0.10.0
libtpu: 0.0.40
codegen_flags: <defaults>
</compile_context>

<pallas_src>
import functools

import numpy as np
import jax
import jax.numpy as jnp
from jax import lax
from jax.experimental import pallas as pl
from jax.experimental.pallas import tpu as pltpu


def _elu(v):
    # ELU, alpha=1 (matches F.elu / jax.nn.elu).  The negative branch needs
    # expm1-quality precision for small |v|; compute it from exp/log via
    # Kahan's compensation  expm1(x) = (e^x - 1) * x / log(e^x)  (~1 ulp),
    # which lowers to plain EUP exp/log (no reliance on an expm1 lowering).
    vn = jnp.minimum(v, 0.0)
    u = jnp.exp(vn)
    em1 = jnp.where(u == 1.0, vn,
                    jnp.where(u == 0.0, -1.0, (u - 1.0) * vn / jnp.log(u)))
    return jnp.where(v > 0.0, v, em1)


def res_conv_basic_kernel(x_ref, w1_ref, w2_ref, *rest,
                          img_h, do_proj, fold_proj, use_bf16):
    # x_ref  : (rows, W*Cin)        rows = batch_block * H, lanes = (x, cin)
    # w1_ref : (3, W*Cin, n1)       n1 = W*Cout (+ W*Cout when fold_proj)
    # w2_ref : (3, W*Cout, W*Cout)  block-Toeplitz, one matrix per kernel row
    # [wsc_ref]: (W*Cin, W*Cout)    only when the projection is NOT folded
    # b_ref  : (3, W*Cout)          rows: conv1 bias, conv2 bias, proj bias
    # o_ref  : (rows, W*Cout)       lane-dense output slab
    if do_proj and not fold_proj:
        wsc_ref, b_ref, o_ref = rest
    else:
        wsc_ref = None
        b_ref, o_ref = rest

    rows, n_out = o_ref.shape
    mm_dtype = jnp.bfloat16 if use_bf16 else jnp.float32
    dot = functools.partial(jnp.dot, preferred_element_type=jnp.float32)

    # y coordinate of each row inside its image (vertical-halo masks).
    ry = lax.broadcasted_iota(jnp.int32, (rows, 1), 0) % img_h
    top = ry == 0
    bot = ry == img_h - 1

    # Vertical halo via XLU rotates + boundary masks (no concat relayouts).
    def shift_down(v):   # row r <- row r-1; zero at each image's top row
        return jnp.where(top, 0.0, pltpu.roll(v, shift=1, axis=0))

    def shift_up(v):     # row r <- row r+1; zero at each image's bottom row
        return jnp.where(bot, 0.0, pltpu.roll(v, shift=rows - 1, axis=0))

    xf = x_ref[...].astype(jnp.float32)
    xm = xf.astype(mm_dtype)
    x_dn = shift_down(xf).astype(mm_dtype)
    x_up = shift_up(xf).astype(mm_dtype)

    # ---- conv1 (3x3, pad=1): 3 MXU pushes; projection may ride on push #2 ----
    acc1 = (dot(x_dn, w1_ref[0]) +
            dot(xm, w1_ref[1]) +
            dot(x_up, w1_ref[2]))                       # (rows, n1) f32

    h1 = _elu(acc1[:, :n_out] + b_ref[0:1, :])          # (rows, W*Cout) f32

    if do_proj:
        if fold_proj:
            sc = acc1[:, n_out:] + b_ref[2:3, :]        # folded 1x1 projection
        else:
            sc = dot(xm, wsc_ref[...]) + b_ref[2:3, :]  # separate matmul (v5)
    else:
        sc = xf                                         # identity (Cin == Cout)

    # ---- conv2 (3x3, pad=1): 3 MXU pushes ----
    h1m = h1.astype(mm_dtype)
    h_dn = shift_down(h1).astype(mm_dtype)
    h_up = shift_up(h1).astype(mm_dtype)
    acc2 = (dot(h_dn, w2_ref[0]) +
            dot(h1m, w2_ref[1]) +
            dot(h_up, w2_ref[2]))                       # (rows, W*Cout) f32
    h2 = _elu(acc2 + b_ref[1:2, :])

    # ---- residual add + final ELU; dense unmasked 128-lane store ----
    o_ref[...] = _elu(h2 + sc).astype(o_ref.dtype)


def _conv3_row_toeplitz(w, width):
    """w: (3, 3, Cin, Cout) HWIO -> (3, width*Cin, width*Cout).

    mats[dy] applied to a (rows, width*Cin) slab whose row holds image row
    (y + dy - 1) flattened as (x, cin) yields that kernel row's contribution
    to the conv output flattened as (x, cout).  Out-of-range dx taps are
    simply absent, reproducing zero padding along x.
    """
    _, _, cin, cout = w.shape
    dx = np.arange(3)
    xo = np.arange(width)
    xi = np.arange(width)
    sel = (xi[None, :, None] == (xo[None, None, :] + dx[:, None, None] - 1))
    sel = jnp.asarray(sel.astype(np.float32))                       # (3, W, W)
    m = jnp.einsum("dio,ydcf->yicof", sel, w.astype(jnp.float32))
    return m.reshape(3, width * cin, width * cout)


def _block_diag_1x1(w3, width):
    """w3: (Cin, Cout) -> (width*Cin, width*Cout) block diagonal (1x1 conv)."""
    cin, cout = w3.shape
    eye = jnp.eye(width, dtype=jnp.float32)
    return jnp.einsum("io,cf->icof", eye, w3.astype(jnp.float32)).reshape(
        width * cin, width * cout)


def _is_v5_device():
    try:
        return "v5" in jax.devices()[0].device_kind.lower()
    except Exception:
        return False


def _choose_batch_block(n, h, target_rows=768, max_rows=1024):
    """Largest-rows divisor of n such that blocks keep the 8-sublane rule,
    rows stay in/near the 512-1024 sweet spot, and (when possible) there are
    >= 2 grid steps so v7x's two TensorCores both get work.
    TODO(synk): pad N for prime-ish batch sizes instead of degrading to rows=H.
    """
    best_key, best_d = None, None
    for d in range(1, n + 1):
        if n % d:
            continue
        rows, steps = d * h, n // d
        if steps > 1 and rows % 8:
            continue
        key = (steps >= 2, rows <= max_rows, -abs(rows - target_rows))
        if best_key is None or key > best_key:
            best_key, best_d = key, d
    return best_d if best_d is not None else n


@functools.partial(
    jax.jit,
    static_argnames=("num_out_layers", "stride", "batch_block", "use_bf16",
                     "fold_projection"))
def _res_conv_basic_impl(x_nhwc, params, *, num_out_layers, stride,
                         batch_block, use_bf16, fold_projection):
    if stride != 1:
        # TODO(synk): stride=2 needs strided output sampling + strided shortcut.
        raise NotImplementedError("fused ResConvBasic kernel implements stride=1 only")
    N, H, W, Cin = x_nhwc.shape
    Cout = num_out_layers
    do_proj = (Cin != Cout) or (stride == 2)
    fold_proj = bool(do_proj and fold_projection)

    w1, b1, w2, b2, w3, b3 = params
    out_dtype = x_nhwc.dtype
    mm_dtype = jnp.bfloat16 if use_bf16 else jnp.float32

    # Lane-dense 2-D layout: rows = (n, y), lanes = (x, c).  Pure reshape.
    x2d = x_nhwc.reshape(N * H, W * Cin)

    w1_t = _conv3_row_toeplitz(w1, W)                      # (3, W*Cin,  W*Cout)
    w2_t = _conv3_row_toeplitz(w2, W)                      # (3, W*Cout, W*Cout)
    wsc_t = None
    if do_proj:
        proj = _block_diag_1x1(w3.reshape(Cin, Cout), W)   # (W*Cin, W*Cout)
        if fold_proj:
            zeros = jnp.zeros_like(proj)
            w1_t = jnp.concatenate(
                [w1_t, jnp.stack([zeros, proj, zeros])], axis=-1)
        else:
            wsc_t = proj.astype(mm_dtype)
    w1_t = w1_t.astype(mm_dtype)
    w2_t = w2_t.astype(mm_dtype)

    def tile_b(b):
        return jnp.tile(jnp.reshape(b, (1, Cout)).astype(jnp.float32), (1, W))

    b_all = jnp.concatenate(
        [tile_b(b1), tile_b(b2),
         tile_b(b3) if do_proj else jnp.zeros((1, W * Cout), jnp.float32)],
        axis=0)                                            # (3, W*Cout) f32

    grid_steps = N // batch_block
    rows = batch_block * H
    n_out1 = w1_t.shape[-1]

    kernel = functools.partial(res_conv_basic_kernel, img_h=H, do_proj=do_proj,
                               fold_proj=fold_proj, use_bf16=use_bf16)

    in_specs = [
        pl.BlockSpec((rows, W * Cin), lambda i: (i, 0)),
        # Grid-invariant operands (constant index_map -> DMA'd once per buffer).
        pl.BlockSpec((3, W * Cin, n_out1), lambda i: (0, 0, 0)),
        pl.BlockSpec((3, W * Cout, W * Cout), lambda i: (0, 0, 0)),
    ]
    args = [x2d, w1_t, w2_t]
    if do_proj and not fold_proj:
        in_specs.append(pl.BlockSpec((W * Cin, W * Cout), lambda i: (0, 0)))
        args.append(wsc_t)
    in_specs.append(pl.BlockSpec((3, W * Cout), lambda i: (0, 0)))
    args.append(b_all)

    # Explicit VMEM budget: double-buffered activations + resident weights.
    act_item = jnp.dtype(out_dtype).itemsize
    w_item = jnp.dtype(mm_dtype).itemsize
    w_bytes = (w1_t.size + w2_t.size +
               (wsc_t.size if wsc_t is not None else 0)) * w_item
    est = (2 * rows * (W * Cin + W * Cout) * act_item
           + 2 * w_bytes + 2 * b_all.size * 4)
    vmem_limit = int(min(64 << 20, max(32 << 20, 2 * est)))

    out2d = pl.pallas_call(
        kernel,
        out_shape=jax.ShapeDtypeStruct((N * H, W * Cout), out_dtype),
        grid_spec=pltpu.PrefetchScalarGridSpec(
            num_scalar_prefetch=0,
            grid=(grid_steps,),
            in_specs=in_specs,
            out_specs=pl.BlockSpec((rows, W * Cout), lambda i: (i, 0)),
        ),
        compiler_params=pltpu.CompilerParams(
            dimension_semantics=("parallel",),
            vmem_limit_bytes=vmem_limit),
    )(*args)

    return out2d.reshape(N, H, W, Cout)


def res_conv_basic(x_nhwc, params, *, num_out_layers, stride=1,
                   batch_block=None, use_bf16=True, fold_projection=None):
    """ResConvBasic forward (normalize=None) on NHWC input, one fused kernel."""
    N, H, W, Cin = x_nhwc.shape
    if fold_projection is None:
        # v5 MXUs are 128 wide: widening conv1's RHS to 2*W*Cout would force
        # extra N-passes that multiply zero columns, so issue the projection
        # as its own matmul there; on 256-wide v6e/v7x the fold is free.
        fold_projection = not _is_v5_device()
    if batch_block is None:
        batch_block = _choose_batch_block(N, H)
    if N % batch_block:
        raise ValueError(f"batch_block={batch_block} must divide N={N}")
    if N // batch_block > 1 and (batch_block * H) % 8:
        raise ValueError("tiled row blocks must be a multiple of 8 sublanes")
    return _res_conv_basic_impl(
        x_nhwc, params, num_out_layers=num_out_layers, stride=stride,
        batch_block=int(batch_block), use_bf16=bool(use_bf16),
        fold_projection=bool(fold_projection))


def _reference(x_nhwc, params, *, num_out_layers, stride=1):
    """Pure-JAX reference (mirrors the PyTorch forward), for verification."""
    w1, b1, w2, b2, w3, b3 = params
    Cin = x_nhwc.shape[-1]
    do_proj = (Cin != num_out_layers) or (stride == 2)

    def conv(x, w, b, s, p):
        y = lax.conv_general_dilated(
            x, w, (s, s), [(p, p), (p, p)],
            dimension_numbers=("NHWC", "HWIO", "NHWC"))
        return y + b.reshape(1, 1, 1, -1)

    h1 = jax.nn.elu(conv(x_nhwc, w1, b1, stride, 1))
    h2 = jax.nn.elu(conv(h1, w2, b2, 1, 1))
    if do_proj:
        sc = conv(x_nhwc, w3.reshape(1, 1, *w3.shape), b3, stride, 0)
    else:
        sc = x_nhwc
    return jax.nn.elu(h2 + sc)


if __name__ == "__main__":
    # Small shapes consistent with the module: batch=2, Cin=4, Cout=8, 16x16.
    N, Cin, Hs, Ws = 2, 4, 16, 16
    Cout, stride = 8, 1

    key = jax.random.PRNGKey(0)
    kx, k1, k2, k3, kb1, kb2, kb3 = jax.random.split(key, 7)

    # Deterministic synthetic parameters (shapes from nn.Conv2d in __init__).
    w1 = 0.1 * jax.random.normal(k1, (3, 3, Cin, Cout), jnp.float32)   # HWIO
    b1 = 0.05 * jax.random.normal(kb1, (1, Cout), jnp.float32)
    w2 = 0.1 * jax.random.normal(k2, (3, 3, Cout, Cout), jnp.float32)
    b2 = 0.05 * jax.random.normal(kb2, (1, Cout), jnp.float32)
    w3 = 0.1 * jax.random.normal(k3, (Cin, Cout), jnp.float32)          # 1x1
    b3 = 0.05 * jax.random.normal(kb3, (1, Cout), jnp.float32)
    params = (w1, b1, w2, b2, w3, b3)

    # PyTorch input would be NCHW (2, 4, 16, 16); the kernel works in NHWC.
    x_nchw = jax.random.normal(kx, (N, Cin, Hs, Ws), jnp.float32)
    x_nhwc = jnp.transpose(x_nchw, (0, 2, 3, 1))

    ref = _reference(x_nhwc, params, num_out_layers=Cout, stride=stride)

    # Default path: bf16 MXU operands (f32 accumulate + f32 elementwise).
    out = res_conv_basic(x_nhwc, params, num_out_layers=Cout, stride=stride)
    out = jax.block_until_ready(out)
    assert out.shape == (N, Hs, Ws, Cout)
    assert out.dtype == x_nhwc.dtype
    assert jnp.allclose(out, ref, rtol=5e-2, atol=5e-2), (
        float(jnp.max(jnp.abs(out - ref))))

    # f32 MXU operand path: tight check of the fused math vs the reference.
    out_f32 = res_conv_basic(x_nhwc, params, num_out_layers=Cout,
                             stride=stride, use_bf16=False)
    out_f32 = jax.block_until_ready(out_f32)
    assert jnp.allclose(out_f32, ref, rtol=1e-4, atol=1e-4), (
        float(jnp.max(jnp.abs(out_f32 - ref))))

    # Exercise both projection layouts (folded for v6e/v7x, split for v5).
    for fold in (True, False):
        o = jax.block_until_ready(
            res_conv_basic(x_nhwc, params, num_out_layers=Cout, stride=stride,
                           fold_projection=fold))
        assert jnp.allclose(o, ref, rtol=5e-2, atol=5e-2), (
            fold, float(jnp.max(jnp.abs(o - ref))))

    # bf16 activations end-to-end (producer hands bf16, output stays bf16).
    x_bf16 = x_nhwc.astype(jnp.bfloat16)
    out_bf16 = jax.block_until_ready(
        res_conv_basic(x_bf16, params, num_out_layers=Cout, stride=stride))
    assert out_bf16.dtype == jnp.bfloat16
    assert jnp.allclose(out_bf16.astype(jnp.float32), ref, rtol=1e-1, atol=1e-1), (
        float(jnp.max(jnp.abs(out_bf16.astype(jnp.float32) - ref))))

    print("KERNEL_OK")
</pallas_src>

<mosaic_0001>
module attributes {stable_mosaic.version = 11 : i64} {
  func.func @res_conv_basic_kernel(%arg0: i32, %arg1: memref<16x64xf32, #tpu.memory_space<vmem>>, %arg2: memref<3x64x256xbf16, #tpu.memory_space<vmem>>, %arg3: memref<3x128x128xbf16, #tpu.memory_space<vmem>>, %arg4: memref<3x128xf32, #tpu.memory_space<vmem>>, %arg5: memref<16x128xf32, #tpu.memory_space<vmem>>) attributes {dimension_semantics = [#tpu.dimension_semantics<parallel>], iteration_bounds = array<i64: 2>, scalar_prefetch = 0 : i64, scratch_operands = 0 : i64, tpu.core_type = #tpu.core_type<tc>, window_params = [{transform_indices = @transform_0, window_bounds = array<i64: 16, 64>}, {pipeline_mode = #tpu.pipeline_mode<synchronous>, transform_indices = @transform_1, window_bounds = array<i64: 3, 64, 256>}, {pipeline_mode = #tpu.pipeline_mode<synchronous>, transform_indices = @transform_2, window_bounds = array<i64: 3, 128, 128>}, {pipeline_mode = #tpu.pipeline_mode<synchronous>, transform_indices = @transform_3, window_bounds = array<i64: 3, 128>}, {transform_indices = @transform_4, window_bounds = array<i64: 16, 128>}]} {
    %0 = tpu.iota {dimensions = array<i32: 0>} : vector<16x1xi32>
    %c16_i32 = arith.constant 16 : i32
    %c0_i32 = arith.constant 0 : i32
    %1 = arith.cmpi eq, %c16_i32, %c0_i32 : i32
    %c1_i32 = arith.constant 1 : i32
    %2 = arith.select %1, %c1_i32, %c16_i32 : i32
    %3 = vector.broadcast %2 : i32 to vector<16x1xi32>
    %4 = arith.remsi %0, %3 : vector<16x1xi32>
    %c0_i32_0 = arith.constant 0 : i32
    %5 = vector.broadcast %c0_i32_0 : i32 to vector<16x1xi32>
    %6 = arith.cmpi ne, %4, %5 : vector<16x1xi32>
    %c0_i32_1 = arith.constant 0 : i32
    %7 = vector.broadcast %c0_i32_1 : i32 to vector<16x1xi32>
    %8 = arith.cmpi slt, %4, %7 : vector<16x1xi32>
    %c0_i32_2 = arith.constant 0 : i32
    %9 = arith.cmpi slt, %2, %c0_i32_2 : i32
    %10 = vector.broadcast %9 : i1 to vector<16x1xi1>
    %11 = vector.broadcast %10 : vector<16x1xi1> to vector<16x1xi1>
    %12 = arith.xori %8, %11 : vector<16x1xi1>
    %13 = arith.andi %12, %6 : vector<16x1xi1>
    %14 = vector.broadcast %2 : i32 to vector<16x1xi32>
    %15 = arith.addi %4, %14 : vector<16x1xi32>
    %16 = arith.select %13, %15, %4 : vector<16x1xi1>, vector<16x1xi32>
    %c0_i32_3 = arith.constant 0 : i32
    %17 = vector.broadcast %c0_i32_3 : i32 to vector<16x1xi32>
    %18 = arith.cmpi eq, %16, %17 : vector<16x1xi32>
    %c15_i32 = arith.constant 15 : i32
    %19 = vector.broadcast %c15_i32 : i32 to vector<16x1xi32>
    %20 = arith.cmpi eq, %16, %19 : vector<16x1xi32>
    %c0 = arith.constant 0 : index
    %c0_4 = arith.constant 0 : index
    %21 = vector.load %arg1[%c0, %c0_4] : memref<16x64xf32, #tpu.memory_space<vmem>>, vector<16x64xf32>
    %22 = arith.truncf %21 : vector<16x64xf32> to vector<16x64xbf16>
    %c1_i32_5 = arith.constant 1 : i32
    %23 = tpu.dynamic_rotate %21 by %c1_i32_5 dim 0 : vector<16x64xf32>, i32 -> vector<16x64xf32>
    %cst = arith.constant 0.000000e+00 : f32
    %24 = vector.shape_cast %18 : vector<16x1xi1> to vector<16x1xi1>
    %25 = vector.broadcast %24 : vector<16x1xi1> to vector<16x64xi1>
    %26 = vector.broadcast %cst : f32 to vector<16x64xf32>
    %27 = arith.select %25, %26, %23 : vector<16x64xi1>, vector<16x64xf32>
    %28 = arith.truncf %27 : vector<16x64xf32> to vector<16x64xbf16>
    %c15_i32_6 = arith.constant 15 : i32
    %29 = tpu.dynamic_rotate %21 by %c15_i32_6 dim 0 : vector<16x64xf32>, i32 -> vector<16x64xf32>
    %cst_7 = arith.constant 0.000000e+00 : f32
    %30 = vector.shape_cast %20 : vector<16x1xi1> to vector<16x1xi1>
    %31 = vector.broadcast %30 : vector<16x1xi1> to vector<16x64xi1>
    %32 = vector.broadcast %cst_7 : f32 to vector<16x64xf32>
    %33 = arith.select %31, %32, %29 : vector<16x64xi1>, vector<16x64xf32>
    %34 = arith.truncf %33 : vector<16x64xf32> to vector<16x64xbf16>
    %c0_8 = arith.constant 0 : index
    %c0_9 = arith.constant 0 : index
    %c0_10 = arith.constant 0 : index
    %35 = vector.load %arg2[%c0_8, %c0_9, %c0_10] : memref<3x64x256xbf16, #tpu.memory_space<vmem>>, vector<1x64x256xbf16>
    %36 = vector.shape_cast %35 : vector<1x64x256xbf16> to vector<64x256xbf16>
    %cst_11 = arith.constant dense<0.000000e+00> : vector<16x256xf32>
    %37 = tpu.matmul %28, %36, %cst_11 {dimension_numbers = #tpu.dot_dimension_numbers<[1], [0], [0], [1], [0, 0, 1, 1], [], []>} : vector<16x64xbf16>, vector<64x256xbf16>, vector<16x256xf32> -> vector<16x256xf32>
    %c1 = arith.constant 1 : index
    %c0_12 = arith.constant 0 : index
    %c0_13 = arith.constant 0 : index
    %38 = vector.load %arg2[%c1, %c0_12, %c0_13] : memref<3x64x256xbf16, #tpu.memory_space<vmem>>, vector<1x64x256xbf16>
    %39 = vector.shape_cast %38 : vector<1x64x256xbf16> to vector<64x256xbf16>
    %cst_14 = arith.constant dense<0.000000e+00> : vector<16x256xf32>
    %40 = tpu.matmul %22, %39, %cst_14 {dimension_numbers = #tpu.dot_dimension_numbers<[1], [0], [0], [1], [0, 0, 1, 1], [], []>} : vector<16x64xbf16>, vector<64x256xbf16>, vector<16x256xf32> -> vector<16x256xf32>
    %41 = arith.addf %37, %40 : vector<16x256xf32>
    %c2 = arith.constant 2 : index
    %c0_15 = arith.constant 0 : index
    %c0_16 = arith.constant 0 : index
    %42 = vector.load %arg2[%c2, %c0_15, %c0_16] : memref<3x64x256xbf16, #tpu.memory_space<vmem>>, vector<1x64x256xbf16>
    %43 = vector.shape_cast %42 : vector<1x64x256xbf16> to vector<64x256xbf16>
    %cst_17 = arith.constant dense<0.000000e+00> : vector<16x256xf32>
    %44 = tpu.matmul %34, %43, %cst_17 {dimension_numbers = #tpu.dot_dimension_numbers<[1], [0], [0], [1], [0, 0, 1, 1], [], []>} : vector<16x64xbf16>, vector<64x256xbf16>, vector<16x256xf32> -> vector<16x256xf32>
    %45 = arith.addf %41, %44 : vector<16x256xf32>
    %46 = vector.extract_strided_slice %45 {offsets = [0, 0], sizes = [16, 128], strides = [1, 1]} : vector<16x256xf32> to vector<16x128xf32>
    %c0_18 = arith.constant 0 : index
    %c0_19 = arith.constant 0 : index
    %47 = vector.load %arg4[%c0_18, %c0_19] : memref<3x128xf32, #tpu.memory_space<vmem>>, vector<1x128xf32>
    %48 = vector.broadcast %47 : vector<1x128xf32> to vector<16x128xf32>
    %49 = arith.addf %46, %48 : vector<16x128xf32>
    %cst_20 = arith.constant 0.000000e+00 : f32
    %50 = vector.broadcast %cst_20 : f32 to vector<16x128xf32>
    %51 = arith.minimumf %49, %50 : vector<16x128xf32>
    %52 = math.exp %51 : vector<16x128xf32>
    %cst_21 = arith.constant 1.000000e+00 : f32
    %53 = vector.broadcast %cst_21 : f32 to vector<16x128xf32>
    %54 = arith.cmpf oeq, %52, %53 : vector<16x128xf32>
    %cst_22 = arith.constant 0.000000e+00 : f32
    %55 = vector.broadcast %cst_22 : f32 to vector<16x128xf32>
    %56 = arith.cmpf oeq, %52, %55 : vector<16x128xf32>
    %cst_23 = arith.constant 1.000000e+00 : f32
    %57 = vector.broadcast %cst_23 : f32 to vector<16x128xf32>
    %58 = arith.subf %52, %57 : vector<16x128xf32>
    %59 = arith.mulf %58, %51 : vector<16x128xf32>
    %60 = math.log %52 : vector<16x128xf32>
    %61 = arith.divf %59, %60 : vector<16x128xf32>
    %cst_24 = arith.constant -1.000000e+00 : f32
    %62 = vector.broadcast %cst_24 : f32 to vector<16x128xf32>
    %63 = arith.select %56, %62, %61 : vector<16x128xi1>, vector<16x128xf32>
    %64 = arith.select %54, %51, %63 : vector<16x128xi1>, vector<16x128xf32>
    %cst_25 = arith.constant 0.000000e+00 : f32
    %65 = vector.broadcast %cst_25 : f32 to vector<16x128xf32>
    %66 = arith.cmpf ogt, %49, %65 : vector<16x128xf32>
    %67 = arith.select %66, %49, %64 : vector<16x128xi1>, vector<16x128xf32>
    %68 = vector.extract_strided_slice %45 {offsets = [0, 128], sizes = [16, 128], strides = [1, 1]} : vector<16x256xf32> to vector<16x128xf32>
    %c2_26 = arith.constant 2 : index
    %c0_27 = arith.constant 0 : index
    %69 = vector.load %arg4[%c2_26, %c0_27] : memref<3x128xf32, #tpu.memory_space<vmem>>, vector<1x128xf32>
    %70 = vector.broadcast %69 : vector<1x128xf32> to vector<16x128xf32>
    %71 = arith.addf %68, %70 : vector<16x128xf32>
    %72 = arith.truncf %67 : vector<16x128xf32> to vector<16x128xbf16>
    %c1_i32_28 = arith.constant 1 : i32
    %73 = tpu.dynamic_rotate %67 by %c1_i32_28 dim 0 : vector<16x128xf32>, i32 -> vector<16x128xf32>
    %cst_29 = arith.constant 0.000000e+00 : f32
    %74 = vector.shape_cast %18 : vector<16x1xi1> to vector<16x1xi1>
    %75 = vector.broadcast %74 : vector<16x1xi1> to vector<16x128xi1>
    %76 = vector.broadcast %cst_29 : f32 to vector<16x128xf32>
    %77 = arith.select %75, %76, %73 : vector<16x128xi1>, vector<16x128xf32>
    %78 = arith.truncf %77 : vector<16x128xf32> to vector<16x128xbf16>
    %c15_i32_30 = arith.constant 15 : i32
    %79 = tpu.dynamic_rotate %67 by %c15_i32_30 dim 0 : vector<16x128xf32>, i32 -> vector<16x128xf32>
    %cst_31 = arith.constant 0.000000e+00 : f32
    %80 = vector.shape_cast %20 : vector<16x1xi1> to vector<16x1xi1>
    %81 = vector.broadcast %80 : vector<16x1xi1> to vector<16x128xi1>
    %82 = vector.broadcast %cst_31 : f32 to vector<16x128xf32>
    %83 = arith.select %81, %82, %79 : vector<16x128xi1>, vector<16x128xf32>
    %84 = arith.truncf %83 : vector<16x128xf32> to vector<16x128xbf16>
    %c0_32 = arith.constant 0 : index
    %c0_33 = arith.constant 0 : index
    %c0_34 = arith.constant 0 : index
    %85 = vector.load %arg3[%c0_32, %c0_33, %c0_34] : memref<3x128x128xbf16, #tpu.memory_space<vmem>>, vector<1x128x128xbf16>
    %86 = vector.shape_cast %85 : vector<1x128x128xbf16> to vector<128x128xbf16>
    %cst_35 = arith.constant dense<0.000000e+00> : vector<16x128xf32>
    %87 = tpu.matmul %78, %86, %cst_35 {dimension_numbers = #tpu.dot_dimension_numbers<[1], [0], [0], [1], [0, 0, 1, 1], [], []>} : vector<16x128xbf16>, vector<128x128xbf16>, vector<16x128xf32> -> vector<16x128xf32>
    %c1_36 = arith.constant 1 : index
    %c0_37 = arith.constant 0 : index
    %c0_38 = arith.constant 0 : index
    %88 = vector.load %arg3[%c1_36, %c0_37, %c0_38] : memref<3x128x128xbf16, #tpu.memory_space<vmem>>, vector<1x128x128xbf16>
    %89 = vector.shape_cast %88 : vector<1x128x128xbf16> to vector<128x128xbf16>
    %cst_39 = arith.constant dense<0.000000e+00> : vector<16x128xf32>
    %90 = tpu.matmul %72, %89, %cst_39 {dimension_numbers = #tpu.dot_dimension_numbers<[1], [0], [0], [1], [0, 0, 1, 1], [], []>} : vector<16x128xbf16>, vector<128x128xbf16>, vector<16x128xf32> -> vector<16x128xf32>
    %91 = arith.addf %87, %90 : vector<16x128xf32>
    %c2_40 = arith.constant 2 : index
    %c0_41 = arith.constant 0 : index
    %c0_42 = arith.constant 0 : index
    %92 = vector.load %arg3[%c2_40, %c0_41, %c0_42] : memref<3x128x128xbf16, #tpu.memory_space<vmem>>, vector<1x128x128xbf16>
    %93 = vector.shape_cast %92 : vector<1x128x128xbf16> to vector<128x128xbf16>
    %cst_43 = arith.constant dense<0.000000e+00> : vector<16x128xf32>
    %94 = tpu.matmul %84, %93, %cst_43 {dimension_numbers = #tpu.dot_dimension_numbers<[1], [0], [0], [1], [0, 0, 1, 1], [], []>} : vector<16x128xbf16>, vector<128x128xbf16>, vector<16x128xf32> -> vector<16x128xf32>
    %95 = arith.addf %91, %94 : vector<16x128xf32>
    %c1_44 = arith.constant 1 : index
    %c0_45 = arith.constant 0 : index
    %96 = vector.load %arg4[%c1_44, %c0_45] : memref<3x128xf32, #tpu.memory_space<vmem>>, vector<1x128xf32>
    %97 = vector.broadcast %96 : vector<1x128xf32> to vector<16x128xf32>
    %98 = arith.addf %95, %97 : vector<16x128xf32>
    %cst_46 = arith.constant 0.000000e+00 : f32
    %99 = vector.broadcast %cst_46 : f32 to vector<16x128xf32>
    %100 = arith.minimumf %98, %99 : vector<16x128xf32>
    %101 = math.exp %100 : vector<16x128xf32>
    %cst_47 = arith.constant 1.000000e+00 : f32
    %102 = vector.broadcast %cst_47 : f32 to vector<16x128xf32>
    %103 = arith.cmpf oeq, %101, %102 : vector<16x128xf32>
    %cst_48 = arith.constant 0.000000e+00 : f32
    %104 = vector.broadcast %cst_48 : f32 to vector<16x128xf32>
    %105 = arith.cmpf oeq, %101, %104 : vector<16x128xf32>
    %cst_49 = arith.constant 1.000000e+00 : f32
    %106 = vector.broadcast %cst_49 : f32 to vector<16x128xf32>
    %107 = arith.subf %101, %106 : vector<16x128xf32>
    %108 = arith.mulf %107, %100 : vector<16x128xf32>
    %109 = math.log %101 : vector<16x128xf32>
    %110 = arith.divf %108, %109 : vector<16x128xf32>
    %cst_50 = arith.constant -1.000000e+00 : f32
    %111 = vector.broadcast %cst_50 : f32 to vector<16x128xf32>
    %112 = arith.select %105, %111, %110 : vector<16x128xi1>, vector<16x128xf32>
    %113 = arith.select %103, %100, %112 : vector<16x128xi1>, vector<16x128xf32>
    %cst_51 = arith.constant 0.000000e+00 : f32
    %114 = vector.broadcast %cst_51 : f32 to vector<16x128xf32>
    %115 = arith.cmpf ogt, %98, %114 : vector<16x128xf32>
    %116 = arith.select %115, %98, %113 : vector<16x128xi1>, vector<16x128xf32>
    %117 = arith.addf %116, %71 : vector<16x128xf32>
    %cst_52 = arith.constant 0.000000e+00 : f32
    %118 = vector.broadcast %cst_52 : f32 to vector<16x128xf32>
    %119 = arith.minimumf %117, %118 : vector<16x128xf32>
    %120 = math.exp %119 : vector<16x128xf32>
    %cst_53 = arith.constant 1.000000e+00 : f32
    %121 = vector.broadcast %cst_53 : f32 to vector<16x128xf32>
    %122 = arith.cmpf oeq, %120, %121 : vector<16x128xf32>
    %cst_54 = arith.constant 0.000000e+00 : f32
    %123 = vector.broadcast %cst_54 : f32 to vector<16x128xf32>
    %124 = arith.cmpf oeq, %120, %123 : vector<16x128xf32>
    %cst_55 = arith.constant 1.000000e+00 : f32
    %125 = vector.broadcast %cst_55 : f32 to vector<16x128xf32>
    %126 = arith.subf %120, %125 : vector<16x128xf32>
    %127 = arith.mulf %126, %119 : vector<16x128xf32>
    %128 = math.log %120 : vector<16x128xf32>
    %129 = arith.divf %127, %128 : vector<16x128xf32>
    %cst_56 = arith.constant -1.000000e+00 : f32
    %130 = vector.broadcast %cst_56 : f32 to vector<16x128xf32>
    %131 = arith.select %124, %130, %129 : vector<16x128xi1>, vector<16x128xf32>
    %132 = arith.select %122, %119, %131 : vector<16x128xi1>, vector<16x128xf32>
    %cst_57 = arith.constant 0.000000e+00 : f32
    %133 = vector.broadcast %cst_57 : f32 to vector<16x128xf32>
    %134 = arith.cmpf ogt, %117, %133 : vector<16x128xf32>
    %135 = arith.select %134, %117, %132 : vector<16x128xi1>, vector<16x128xf32>
    %c0_58 = arith.constant 0 : index
    %c0_59 = arith.constant 0 : index
    %136 = vector.load %arg5[%c0_58, %c0_59] : memref<16x128xf32, #tpu.memory_space<vmem>>, vector<16x128xf32>
    tpu.vector_store %arg5[%c0_58, %c0_59], %135 {strides = array<i32>} : memref<16x128xf32, #tpu.memory_space<vmem>>, vector<16x128xf32>,
    return
  }
  func.func @transform_0(%arg0: i32) -> (i32, i32) {
    %c0_i32 = arith.constant 0 : i32
    %c0_i32_0 = arith.constant 0 : i32
    return %arg0, %c0_i32 : i32, i32
  }
  func.func @transform_1(%arg0: i32) -> (i32, i32, i32) {
    %c0_i32 = arith.constant 0 : i32
    %c0_i32_0 = arith.constant 0 : i32
    %c0_i32_1 = arith.constant 0 : i32
    %c0_i32_2 = arith.constant 0 : i32
    return %c0_i32, %c0_i32_0, %c0_i32_1 : i32, i32, i32
  }
  func.func @transform_2(%arg0: i32) -> (i32, i32, i32) {
    %c0_i32 = arith.constant 0 : i32
    %c0_i32_0 = arith.constant 0 : i32
    %c0_i32_1 = arith.constant 0 : i32
    %c0_i32_2 = arith.constant 0 : i32
    return %c0_i32, %c0_i32_0, %c0_i32_1 : i32, i32, i32
  }
  func.func @transform_3(%arg0: i32) -> (i32, i32) {
    %c0_i32 = arith.constant 0 : i32
    %c0_i32_0 = arith.constant 0 : i32
    %c0_i32_1 = arith.constant 0 : i32
    return %c0_i32, %c0_i32_0 : i32, i32
  }
  func.func @transform_4(%arg0: i32) -> (i32, i32) {
    %c0_i32 = arith.constant 0 : i32
    %c0_i32_0 = arith.constant 0 : i32
    return %arg0, %c0_i32 : i32, i32
  }
}

</mosaic_0001>

<llo_original>
// kernel: _res_conv_basic_impl.1
$region0: #{_res_conv_basic_impl.1}
  #allocation0 [shape = 'u32[]', space=smem, size = 0x4, offset = 0x4, fixed_abs, tag = 'smem constant byte address 0x4 - core index']
  #allocation1 [shape = 'u32[144,128]{1,0:T(1,128)}', space=vmem, size = 0x12000, scoped, tag = 'internal scratch']
  %s0 = inlined_call_operand.vmem [shape: f32[32,64], index: 0, kind: input, shape index: {}]
  %s1 = inlined_call_operand.vmem [shape: bf16[3,64,256], index: 1, kind: input, shape index: {}]
  %s2 = inlined_call_operand.vmem [shape: bf16[3,128,128], index: 2, kind: input, shape index: {}]
  %s3 = inlined_call_operand.vmem [shape: f32[3,128], index: 3, kind: input, shape index: {}]
  %s4 = inlined_call_operand.vmem [shape: f32[32,128], index: 4, kind: output, shape index: {}]
  %s5 = sld [smem:[#allocation0]]
  $region49: #{_res_conv_basic_impl.1} parent=0
    _
  %s7 = ssub.s32 1, %s5
  %s8 = scalar_select 0, %s7, %s5
  loop: start=0, step=1, limit=4
  $region2: #{_res_conv_basic_impl.1} parent=0 // loop_pre_header
    _
  $region3: #{_res_conv_basic_impl.1} parent=0 // loop_header
    %s10 = sphi 0, %s14
    %p11 = scmp.ge.s32.totalorder %s10, 4
    %s20 = sphi 0, %s22
    %s23 = sphi 0, %s20
    %s24 = sphi 0, %s23
    %s40 = sphi 0, %s24
    %s44 = sphi 0, %s44
    %s46 = sphi 0, %s44
    %s47 = sphi 0, %s46
    %s61 = sphi 0, %s47
    %s65 = sphi 0, %s65
    %s67 = sphi 0, %s65
    %s68 = sphi 0, %s67
    %s82 = sphi 0, %s68
    %s86 = sphi 0, %s86
    %s88 = sphi 0, %s86
    %s89 = sphi 0, %s88
    %s103 = sphi 0, %s89
    %s109 = sphi 0, %s111
    %s112 = sphi 0, %s109
    %s113 = sphi 0, %s112
    %s129 = sphi 0, %s113
  $region4: #{_res_conv_basic_impl.1} parent=0 // loop_header_branch
    %13 = sbr.rel (%p11) target = $region8
  $region5: #{_res_conv_basic_impl.1} parent=0 // loop_body
    %s15 = ssub.s32 %s10, 1
    %s16 = ssub.s32 %s10, 2
    %s17 = sadd.s32 %s10, 1
    %s18 = ssub.s32 %s10, %s17
    %p19 = scmp.eq.s32.totalorder %s18, 0
    %s21 = sadd.s32 %s20, 1
    %s22 = scalar_select %p19, %s20, %s21
    %p25 = pneg %p19
    %p26 = scmp.eq.s32.totalorder %s10, 1
    %p27 = por %p25, %p26
    %p28 = scmp.ne.s32.totalorder %s20, %s23
    %p29 = scmp.eq.s32.totalorder %s10, 0
    %p30 = por %p28, %p29
    %p31 = scmp.ne.s32.totalorder %s20, %s23
    %p32 = scmp.eq.s32.totalorder %s15, 1
    %p33 = por %p31, %p32
    %p34 = scmp.ne.s32.totalorder %s23, %s24
    %p35 = scmp.eq.s32.totalorder %s15, 0
    %p36 = por %p34, %p35
    %p37 = scmp.ne.s32.totalorder %s23, %s24
    %p38 = scmp.eq.s32.totalorder %s16, 1
    %p39 = por %p37, %p38
    %p41 = scmp.ne.s32.totalorder %s24, %s40
    %p42 = scmp.eq.s32.totalorder %s16, 0
    %p43 = por %p41, %p42
    %s45 = sadd.s32 %s44, 1
    %p48 = scmp.eq.s32.totalorder %s10, 1
    %p49 = scmp.ne.s32.totalorder %s44, %s46
    %p50 = scmp.eq.s32.totalorder %s10, 0
    %p51 = por %p49, %p50
    %p52 = scmp.ne.s32.totalorder %s44, %s46
    %p53 = scmp.eq.s32.totalorder %s15, 1
    %p54 = por %p52, %p53
    %p55 = scmp.ne.s32.totalorder %s46, %s47
    %p56 = scmp.eq.s32.totalorder %s15, 0
    %p57 = por %p55, %p56
    %p58 = scmp.ne.s32.totalorder %s46, %s47
    %p59 = scmp.eq.s32.totalorder %s16, 1
    %p60 = por %p58, %p59
    %p62 = scmp.ne.s32.totalorder %s47, %s61
    %p63 = scmp.eq.s32.totalorder %s16, 0
    %p64 = por %p62, %p63
    %s66 = sadd.s32 %s65, 1
    %p69 = scmp.eq.s32.totalorder %s10, 1
    %p70 = scmp.ne.s32.totalorder %s65, %s67
    %p71 = scmp.eq.s32.totalorder %s10, 0
    %p72 = por %p70, %p71
    %p73 = scmp.ne.s32.totalorder %s65, %s67
    %p74 = scmp.eq.s32.totalorder %s15, 1
    %p75 = por %p73, %p74
    %p76 = scmp.ne.s32.totalorder %s67, %s68
    %p77 = scmp.eq.s32.totalorder %s15, 0
    %p78 = por %p76, %p77
    %p79 = scmp.ne.s32.totalorder %s67, %s68
    %p80 = scmp.eq.s32.totalorder %s16, 1
    %p81 = por %p79, %p80
    %p83 = scmp.ne.s32.totalorder %s68, %s82
    %p84 = scmp.eq.s32.totalorder %s16, 0
    %p85 = por %p83, %p84
    %s87 = sadd.s32 %s86, 1
    %p90 = scmp.eq.s32.totalorder %s10, 1
    %p91 = scmp.ne.s32.totalorder %s86, %s88
    %p92 = scmp.eq.s32.totalorder %s10, 0
    %p93 = por %p91, %p92
    %p94 = scmp.ne.s32.totalorder %s86, %s88
    %p95 = scmp.eq.s32.totalorder %s15, 1
    %p96 = por %p94, %p95
    %p97 = scmp.ne.s32.totalorder %s88, %s89
    %p98 = scmp.eq.s32.totalorder %s15, 0
    %p99 = por %p97, %p98
    %p100 = scmp.ne.s32.totalorder %s88, %s89
    %p101 = scmp.eq.s32.totalorder %s16, 1
    %p102 = por %p100, %p101
    %p104 = scmp.ne.s32.totalorder %s89, %s103
    %p105 = scmp.eq.s32.totalorder %s16, 0
    %p106 = por %p104, %p105
    %s107 = ssub.s32 %s10, %s17
    %p108 = scmp.eq.s32.totalorder %s107, 0
    %s110 = sadd.s32 %s109, 1
    %s111 = scalar_select %p108, %s109, %s110
    %p114 = pneg %p108
    %p115 = scmp.eq.s32.totalorder %s10, 1
    %p116 = por %p114, %p115
    %p117 = scmp.ne.s32.totalorder %s109, %s112
    %p118 = scmp.eq.s32.totalorder %s10, 0
    %p119 = por %p117, %p118
    %p120 = scmp.ne.s32.totalorder %s109, %s112
    %p121 = scmp.eq.s32.totalorder %s15, 1
    %p122 = por %p120, %p121
    %p123 = scmp.ne.s32.totalorder %s112, %s113
    %p124 = scmp.eq.s32.totalorder %s15, 0
    %p125 = por %p123, %p124
    %p126 = scmp.ne.s32.totalorder %s112, %s113
    %p127 = scmp.eq.s32.totalorder %s16, 1
    %p128 = por %p126, %p127
    %p130 = scmp.ne.s32.totalorder %s113, %s129
    %p131 = scmp.eq.s32.totalorder %s16, 0
    %p132 = por %p130, %p131
    %p133 = scmp.le.s32.totalorder 1, %s10
    %p134 = scmp.lt.s32.totalorder %s10, 3
    %p135 = pnand %p133, %p134
    %p136 = pneg %p135
    // Predicated region
    $region9: #{_res_conv_basic_impl.1} parent=5 // pred_check
      _
    $region10: #{_res_conv_basic_impl.1} parent=5 // pred_check_branch
      %138 = sbr.rel (%p135) target = $region12
    $region11: #{_res_conv_basic_impl.1} parent=5 // pred_region
      %s139 = ssub.s32 %s10, 1
      // Predicated region
      $region13: #{_res_conv_basic_impl.1} parent=11 // pred_check
        %p140 = pneg %p57
      $region14: #{_res_conv_basic_impl.1} parent=11 // pred_check_branch
        %142 = sbr.rel (%p140) target = $region16
      $region15: #{_res_conv_basic_impl.1} parent=11 // pred_region
        _
      $region16: #{_res_conv_basic_impl.1} parent=11 // pred_fallthru
        _
      // Predicated region
      $region17: #{_res_conv_basic_impl.1} parent=11 // pred_check
        %p143 = pneg %p78
      $region18: #{_res_conv_basic_impl.1} parent=11 // pred_check_branch
        %145 = sbr.rel (%p143) target = $region20
      $region19: #{_res_conv_basic_impl.1} parent=11 // pred_region
        _
      $region20: #{_res_conv_basic_impl.1} parent=11 // pred_fallthru
        _
      // Predicated region
      $region21: #{_res_conv_basic_impl.1} parent=11 // pred_check
        %p146 = pneg %p99
      $region22: #{_res_conv_basic_impl.1} parent=11 // pred_check_branch
        %148 = sbr.rel (%p146) target = $region24
      $region23: #{_res_conv_basic_impl.1} parent=11 // pred_region
        _
      $region24: #{_res_conv_basic_impl.1} parent=11 // pred_fallthru
        _
    $region12: #{_res_conv_basic_impl.1} parent=5 // pred_fallthru
      _
    %p149 = scmp.lt.s32.totalorder %s10, 2
    // Predicated region
    $region25: #{_res_conv_basic_impl.1} parent=5 // pred_check
      %p150 = pneg %p149
    $region26: #{_res_conv_basic_impl.1} parent=5 // pred_check_branch
      %152 = sbr.rel (%p150) target = $region28
    $region27: #{_res_conv_basic_impl.1} parent=5 // pred_region
      // Predicated region
      $region29: #{_res_conv_basic_impl.1} parent=27 // pred_check
        %p153 = pneg %p30
      $region30: #{_res_conv_basic_impl.1} parent=27 // pred_check_branch
        %155 = sbr.rel (%p153) target = $region32
      $region31: #{_res_conv_basic_impl.1} parent=27 // pred_region
        %s156 = smul.u32 2, %s10
        %p157 = scmp.lt.s32.totalorder %s156, 3
        %s158 = scalar_select %p157, %s156, 3
        %s159 = smul.addr %s158, 8
        %s160 = scalar_lea.vmem %s0, %s159
        %s161 = smul.u32 2, %s10
      $region32: #{_res_conv_basic_impl.1} parent=27 // pred_fallthru
        _
    $region28: #{_res_conv_basic_impl.1} parent=5 // pred_fallthru
      _
    %p162 = scmp.le.s32.totalorder 1, %s10
    %p163 = scmp.lt.s32.totalorder %s10, 3
    %p164 = pnand %p162, %p163
    %p165 = pneg %p164
    // Predicated region
    $region33: #{_res_conv_basic_impl.1} parent=5 // pred_check
      _
    $region34: #{_res_conv_basic_impl.1} parent=5 // pred_check_branch
      %167 = sbr.rel (%p164) target = $region36
    $region35: #{_res_conv_basic_impl.1} parent=5 // pred_region
      %s168 = ssub.s32 %s10, 1
      %s169 = smul.u32 2, %s15
      %p170 = scmp.lt.s32.totalorder %s169, 3
      %s171 = scalar_select %p170, %s169, 3
      %s172 = smul.addr %s171, 8
      %s173 = scalar_lea.vmem %s0, %s172
      %p174 = pneg %p36
      %p175 = pneg %p33
      %p176 = pneg %p57
      %p177 = pneg %p54
      %p178 = pneg %p78
      %p179 = pneg %p75
      %p180 = pneg %p99
      %p181 = pneg %p96
      %p182 = pneg %p125
      %p183 = pneg %p122
      %s184 = smul.u32 2, %s15
      %p185 = scmp.lt.s32.totalorder %s184, 3
      %s186 = scalar_select %p185, %s184, 3
      %s187 = smul.addr %s186, 8
      %s188 = scalar_lea.vmem %s4, %s187
      %s189 = smul.u32 2, %s15
      %p190 = scmp.lt.s32.totalorder %s189, 3
      %s191 = scalar_select %p190, %s189, 3
      %s192 = smul.addr %s191, 8
      %s193 = scalar_lea.vmem %s0, %s192
      %s194 = smul.u32 2, %s15
      %s195 = smul.u32 2, %s15
      %p196 = scmp.lt.s32.totalorder %s195, 3
      %s197 = scalar_select %p196, %s195, 3
      %s198 = smul.addr %s197, 8
      %s199 = scalar_lea.vmem %s4, %s198
      %s200 = smul.u32 2, %s15
      %v202 = vlaneseq
      %v203 = vshrl.u32 %v202, 7
      %v204 = vadd.s32 %v203, 8
      %vm205 = vcmp.lt.s32.totalorder %v203, 0
      %v206 = vsub.s32 0, %v203
      %v207 = vsel %vm205, %v206, %v203
      %v208 = vshrl.u32 %v207, 4
      %v209 = vand.u32 %v207, 15
      %v210 = vsub.s32 0, %v209
      %v211 = vsel %vm205, %v210, %v209
      %vm212 = vcmp.lt.s32.totalorder %v204, 0
      %v213 = vsub.s32 0, %v204
      %v214 = vsel %vm212, %v213, %v204
      %v215 = vshrl.u32 %v214, 4
      %v216 = vand.u32 %v214, 15
      %v217 = vsub.s32 0, %v216
      %v218 = vsel %vm212, %v217, %v216
      %vm219 = vcmp.ne.s32.totalorder %v211, 0
      %vm220 = vcmp.ne.s32.totalorder %v218, 0
      %vm221 = vcmp.lt.s32.totalorder %v211, 0
      %vm222 = vcmp.lt.s32.totalorder %v218, 0
      %vm223 = vmand %vm221, %vm219
      %vm224 = vmand %vm222, %vm220
      %v225 = vadd.s32 %v211, 16
      %v226 = vadd.s32 %v218, 16
      %v227 = vsel %vm223, %v225, %v211
      %v228 = vsel %vm224, %v226, %v218
      %vm229 = vcmp.eq.s32.totalorder %v227, 0
      %vm230 = vcmp.eq.s32.totalorder %v228, 0
      %vm231 = vcmp.eq.s32.totalorder %v227, 15
      %vm232 = vcmp.eq.s32.totalorder %v228, 15
      %v233 = vld [vmem:[%s193] sm:$0xff]
      %v234 = vld [vmem:[%s193 + $0x8] sm:$0xff]
      %v235 = vpack.c.bf16 %v234, %v233
      %v236 = vrot.slane %v233, 7
      %v237 = vrot.slane %v234, 7
      %vm238 = vcmp.lt.s32.totalorder %v203, 1
      %v239 = vsel %vm238, %v236, %v237
      %v240 = vsel %vm238, %v237, %v236
      %v241 = vsel %vm229, 1, 0
      %v242 = vsel %vm230, 1, 0
      %vm243 = vcmp.eq.s32.totalorder %v241, 1
      %vm244 = vcmp.eq.s32.totalorder %v242, 1
      %v245 = vsel %vm243, 0.0, %v240
      %v246 = vsel %vm244, 0.0, %v239
      %v247 = vpack.c.bf16 %v246, %v245
      %v248 = vrot.slane %v233, 1
      %v249 = vrot.slane %v234, 1
      %vm250 = vcmp.lt.s32.totalorder %v203, 7
      %v251 = vsel %vm250, %v248, %v249
      %v252 = vsel %vm250, %v249, %v248
      %v253 = vsel %vm231, 1, 0
      %v254 = vsel %vm232, 1, 0
      %vm255 = vcmp.eq.s32.totalorder %v253, 1
      %vm256 = vcmp.eq.s32.totalorder %v254, 1
      %v257 = vsel %vm255, 0.0, %v251
      %v258 = vsel %vm256, 0.0, %v252
      %v259 = vpack.c.bf16 %v258, %v257
      %v260 = vld [vmem:[%s1] sm:$0xff]
      %v261 = vld [vmem:[%s1 + $0x8] sm:$0xff]
      %v262 = vld [vmem:[%s1 + $0x10] sm:$0xff]
      %v263 = vld [vmem:[%s1 + $0x18] sm:$0xff]
      %v264 = vld [vmem:[%s1 + $0x20] sm:$0xff]
      %v265 = vld [vmem:[%s1 + $0x28] sm:$0xff]
      %v266 = vld [vmem:[%s1 + $0x30] sm:$0xff]
      %v267 = vld [vmem:[%s1 + $0x38] sm:$0xff]
      %s268 = scalar_lea.vmem %s1, 64
      %v269 = vld [vmem:[%s268] sm:$0xff]
      %v270 = vld [vmem:[%s268 + $0x8] sm:$0xff]
      %v271 = vld [vmem:[%s268 + $0x10] sm:$0xff]
      %v272 = vld [vmem:[%s268 + $0x18] sm:$0xff]
      %v273 = vld [vmem:[%s268 + $0x20] sm:$0xff]
      %v274 = vld [vmem:[%s268 + $0x28] sm:$0xff]
      %v275 = vld [vmem:[%s268 + $0x30] sm:$0xff]
      %v276 = vld [vmem:[%s268 + $0x38] sm:$0xff]
      %v285 = vunpack.c.l.b16 %v269
      %v286 = vunpack.c.h.b16 %v269
      %v287 = vunpack.c.l.b16 %v270
      %v288 = vunpack.c.h.b16 %v270
      %v289 = vunpack.c.l.b16 %v271
      %v290 = vunpack.c.h.b16 %v271
      %v291 = vunpack.c.l.b16 %v272
      %v292 = vunpack.c.h.b16 %v272
      %v293 = vunpack.c.l.b16 %v273
      %v294 = vunpack.c.h.b16 %v273
      %v295 = vunpack.c.l.b16 %v274
      %v296 = vunpack.c.h.b16 %v274
      %v297 = vunpack.c.l.b16 %v275
      %v298 = vunpack.c.h.b16 %v275
      %v299 = vunpack.c.l.b16 %v276
      %v300 = vunpack.c.h.b16 %v276
      %v301 = vpack.c.b16 %v287, %v285
      %v302 = vpack.c.b16 %v288, %v286
      %v303 = vpack.c.b16 %v291, %v289
      %v304 = vpack.c.b16 %v292, %v290
      %v305 = vpack.c.b16 %v295, %v293
      %v306 = vpack.c.b16 %v296, %v294
      %v307 = vpack.c.b16 %v299, %v297
      %v308 = vpack.c.b16 %v300, %v298
      %vm317 = vcmask 523264
      %v319 = vsel %vm317, %v235, 0
      %321 = vmatprep.subr.bf16.mxu0 %v302
      %322 = vmatpush1.bf16.msra.mxu0 %v301
      %323 = vmatprep.subr.bf16.mxu0 %v304
      %324 = vmatpush1.bf16.msra.mxu0 %v303
      %325 = vmatprep.subr.bf16.mxu0 %v306
      %326 = vmatpush1.bf16.msra.mxu0 %v305
      %327 = vmatprep.subr.bf16.mxu0 %v308
      %328 = vmatpush1.bf16.msra.mxu0 %v307
      %329 = vmatprep.subr.bf16.mxu0 0
      %330 = vmatpush1.bf16.msra.mxu0 0
      %331 = vmatprep.subr.bf16.mxu0 0
      %332 = vmatpush1.bf16.msra.mxu0 0
      %333 = vmatprep.subr.bf16.mxu0 0
      %334 = vmatpush1.bf16.msra.mxu0 0
      %335 = vmatprep.subr.bf16.mxu0 0
      %336 = vmatpush1.bf16.msra.mxu0 0
      %337 = vmatprep.subr.bf16.mxu0 0
      %338 = vmatpush1.bf16.msra.mxu0 0
      %339 = vmatprep.subr.bf16.mxu0 0
      %340 = vmatpush1.bf16.msra.mxu0 0
      %341 = vmatprep.subr.bf16.mxu0 0
      %342 = vmatpush1.bf16.msra.mxu0 0
      %343 = vmatprep.subr.bf16.mxu0 0
      %344 = vmatpush1.bf16.msra.mxu0 0
      %345 = vmatprep.subr.bf16.mxu0 0
      %346 = vmatpush1.bf16.msra.mxu0 0
      %347 = vmatprep.subr.bf16.mxu0 0
      %348 = vmatpush1.bf16.msra.mxu0 0
      %349 = vmatprep.subr.bf16.mxu0 0
      %350 = vmatpush1.bf16.msra.mxu0 0
      %351 = vmatprep.subr.bf16.mxu0 0
      %352 = vmatpush1.bf16.msra.mxu0 0
      %353 = vmatprep.mubr.bf16.mxu0 0
      %354 = vmatmul.mubr.bf16.gmra.mrb[0].mxu0 %v319
      %v355 = vpop.f32.mrb[0].mxu0
      %v356 = vadd.f32 0.0, %v355
      %v357 = vpop.f32.mrb[0].mxu0
      %v358 = vadd.f32 0.0, %v357
      %v359 = vpop.f32.mrb[0].mxu0
      %v360 = vadd.f32 0.0, %v359
      %v361 = vpop.f32.mrb[0].mxu0
      %v362 = vadd.f32 0.0, %v361
      %363 = vdwg.mxu0
      %v372 = vunpack.c.l.b16 %v260
      %v373 = vunpack.c.h.b16 %v260
      %v374 = vunpack.c.l.b16 %v261
      %v375 = vunpack.c.h.b16 %v261
      %v376 = vunpack.c.l.b16 %v262
      %v377 = vunpack.c.h.b16 %v262
      %v378 = vunpack.c.l.b16 %v263
      %v379 = vunpack.c.h.b16 %v263
      %v380 = vunpack.c.l.b16 %v264
      %v381 = vunpack.c.h.b16 %v264
      %v382 = vunpack.c.l.b16 %v265
      %v383 = vunpack.c.h.b16 %v265
      %v384 = vunpack.c.l.b16 %v266
      %v385 = vunpack.c.h.b16 %v266
      %v386 = vunpack.c.l.b16 %v267
      %v387 = vunpack.c.h.b16 %v267
      %v388 = vpack.c.b16 %v374, %v372
      %v389 = vpack.c.b16 %v375, %v373
      %v390 = vpack.c.b16 %v378, %v376
      %v391 = vpack.c.b16 %v379, %v377
      %v392 = vpack.c.b16 %v382, %v380
      %v393 = vpack.c.b16 %v383, %v381
      %v394 = vpack.c.b16 %v386, %v384
      %v395 = vpack.c.b16 %v387, %v385
      %v405 = vsel %vm317, %v247, 0
      %407 = vmatprep.subr.bf16.mxu0 %v389
      %408 = vmatpush1.bf16.msra.mxu0 %v388
      %409 = vmatprep.subr.bf16.mxu0 %v391
      %410 = vmatpush1.bf16.msra.mxu0 %v390
      %411 = vmatprep.subr.bf16.mxu0 %v393
      %412 = vmatpush1.bf16.msra.mxu0 %v392
      %413 = vmatprep.subr.bf16.mxu0 %v395
      %414 = vmatpush1.bf16.msra.mxu0 %v394
      %415 = vmatprep.subr.bf16.mxu0 0
      %416 = vmatpush1.bf16.msra.mxu0 0
      %417 = vmatprep.subr.bf16.mxu0 0
      %418 = vmatpush1.bf16.msra.mxu0 0
      %419 = vmatprep.subr.bf16.mxu0 0
      %420 = vmatpush1.bf16.msra.mxu0 0
      %421 = vmatprep.subr.bf16.mxu0 0
      %422 = vmatpush1.bf16.msra.mxu0 0
      %423 = vmatprep.subr.bf16.mxu0 0
      %424 = vmatpush1.bf16.msra.mxu0 0
      %425 = vmatprep.subr.bf16.mxu0 0
      %426 = vmatpush1.bf16.msra.mxu0 0
      %427 = vmatprep.subr.bf16.mxu0 0
      %428 = vmatpush1.bf16.msra.mxu0 0
      %429 = vmatprep.subr.bf16.mxu0 0
      %430 = vmatpush1.bf16.msra.mxu0 0
      %431 = vmatprep.subr.bf16.mxu0 0
      %432 = vmatpush1.bf16.msra.mxu0 0
      %433 = vmatprep.subr.bf16.mxu0 0
      %434 = vmatpush1.bf16.msra.mxu0 0
      %435 = vmatprep.subr.bf16.mxu0 0
      %436 = vmatpush1.bf16.msra.mxu0 0
      %437 = vmatprep.subr.bf16.mxu0 0
      %438 = vmatpush1.bf16.msra.mxu0 0
      %439 = vmatprep.mubr.bf16.mxu0 0
      %440 = vmatmul.mubr.bf16.gmra.mrb[0].mxu0 %v405
      %v441 = vpop.f32.mrb[0].mxu0
      %v442 = vadd.f32 %v356, %v441
      %v443 = vpop.f32.mrb[0].mxu0
      %v444 = vadd.f32 %v358, %v443
      %v445 = vpop.f32.mrb[0].mxu0
      %v446 = vadd.f32 %v360, %v445
      %v447 = vpop.f32.mrb[0].mxu0
      %v448 = vadd.f32 %v362, %v447
      %449 = vdwg.mxu0
      %s450 = scalar_lea.vmem %s1, 128
      %v451 = vld [vmem:[%s450] sm:$0xff]
      %v452 = vld [vmem:[%s450 + $0x8] sm:$0xff]
      %v453 = vld [vmem:[%s450 + $0x10] sm:$0xff]
      %v454 = vld [vmem:[%s450 + $0x18] sm:$0xff]
      %v455 = vld [vmem:[%s450 + $0x20] sm:$0xff]
      %v456 = vld [vmem:[%s450 + $0x28] sm:$0xff]
      %v457 = vld [vmem:[%s450 + $0x30] sm:$0xff]
      %v458 = vld [vmem:[%s450 + $0x38] sm:$0xff]
      %v467 = vunpack.c.l.b16 %v451
      %v468 = vunpack.c.h.b16 %v451
      %v469 = vunpack.c.l.b16 %v452
      %v470 = vunpack.c.h.b16 %v452
      %v471 = vunpack.c.l.b16 %v453
      %v472 = vunpack.c.h.b16 %v453
      %v473 = vunpack.c.l.b16 %v454
      %v474 = vunpack.c.h.b16 %v454
      %v475 = vunpack.c.l.b16 %v455
      %v476 = vunpack.c.h.b16 %v455
      %v477 = vunpack.c.l.b16 %v456
      %v478 = vunpack.c.h.b16 %v456
      %v479 = vunpack.c.l.b16 %v457
      %v480 = vunpack.c.h.b16 %v457
      %v481 = vunpack.c.l.b16 %v458
      %v482 = vunpack.c.h.b16 %v458
      %v483 = vpack.c.b16 %v469, %v467
      %v484 = vpack.c.b16 %v470, %v468
      %v485 = vpack.c.b16 %v473, %v471
      %v486 = vpack.c.b16 %v474, %v472
      %v487 = vpack.c.b16 %v477, %v475
      %v488 = vpack.c.b16 %v478, %v476
      %v489 = vpack.c.b16 %v481, %v479
      %v490 = vpack.c.b16 %v482, %v480
      %v500 = vsel %vm317, %v259, 0
      %502 = vmatprep.subr.bf16.mxu0 %v484
      %503 = vmatpush1.bf16.msra.mxu0 %v483
      %504 = vmatprep.subr.bf16.mxu0 %v486
      %505 = vmatpush1.bf16.msra.mxu0 %v485
      %506 = vmatprep.subr.bf16.mxu0 %v488
      %507 = vmatpush1.bf16.msra.mxu0 %v487
      %508 = vmatprep.subr.bf16.mxu0 %v490
      %509 = vmatpush1.bf16.msra.mxu0 %v489
      %510 = vmatprep.subr.bf16.mxu0 0
      %511 = vmatpush1.bf16.msra.mxu0 0
      %512 = vmatprep.subr.bf16.mxu0 0
      %513 = vmatpush1.bf16.msra.mxu0 0
      %514 = vmatprep.subr.bf16.mxu0 0
      %515 = vmatpush1.bf16.msra.mxu0 0
      %516 = vmatprep.subr.bf16.mxu0 0
      %517 = vmatpush1.bf16.msra.mxu0 0
      %518 = vmatprep.subr.bf16.mxu0 0
      %519 = vmatpush1.bf16.msra.mxu0 0
      %520 = vmatprep.subr.bf16.mxu0 0
      %521 = vmatpush1.bf16.msra.mxu0 0
      %522 = vmatprep.subr.bf16.mxu0 0
      %523 = vmatpush1.bf16.msra.mxu0 0
      %524 = vmatprep.subr.bf16.mxu0 0
      %525 = vmatpush1.bf16.msra.mxu0 0
      %526 = vmatprep.subr.bf16.mxu0 0
      %527 = vmatpush1.bf16.msra.mxu0 0
      %528 = vmatprep.subr.bf16.mxu0 0
      %529 = vmatpush1.bf16.msra.mxu0 0
      %530 = vmatprep.subr.bf16.mxu0 0
      %531 = vmatpush1.bf16.msra.mxu0 0
      %532 = vmatprep.subr.bf16.mxu0 0
      %533 = vmatpush1.bf16.msra.mxu0 0
      %534 = vmatprep.mubr.bf16.mxu0 0
      %535 = vmatmul.mubr.bf16.gmra.mrb[0].mxu0 %v500
      %v536 = vpop.f32.mrb[0].mxu0
      %v537 = vadd.f32 0.0, %v536
      %v538 = vpop.f32.mrb[0].mxu0
      %v539 = vadd.f32 0.0, %v538
      %v540 = vpop.f32.mrb[0].mxu0
      %v541 = vadd.f32 0.0, %v540
      %v542 = vpop.f32.mrb[0].mxu0
      %v543 = vadd.f32 0.0, %v542
      %544 = vdwg.mxu0
      %v545 = vadd.f32 %v442, %v537
      %v546 = vadd.f32 %v444, %v539
      %v547 = vadd.f32 %v446, %v541
      %v548 = vadd.f32 %v448, %v543
      %v549 = vld [vmem:[%s3] sm:$0x1]
      %v550 = vlaneseq
      %v551 = vshrl.u32 %v550, 7
      %v552 = vsub.s32 0, %v551
      %v553 = vrot.slane %v549, %v552
      %v554 = vadd.f32 %v545, %v553
      %v555 = vadd.f32 %v547, %v553
      %v556 = vmin.f32 %v554, 0.0
      %v557 = vmin.f32 %v555, 0.0
      %v558 = vmul.f32 %v556, 1.442695
      %v559 = vpow.pop %v558
      %v560 = vmul.f32 %v557, 1.442695
      %v561 = vpow.pop %v560
      %vm562 = vcmp.eq.f32.partialorder %v559, 1.0
      %vm563 = vcmp.eq.f32.partialorder %v561, 1.0
      %vm564 = vcmp.eq.f32.partialorder %v559, 0.0
      %vm565 = vcmp.eq.f32.partialorder %v561, 0.0
      %v566 = vsub.f32 %v559, 1.0
      %v567 = vsub.f32 %v561, 1.0
      %v568 = vmul.f32 %v566, %v556
      %v569 = vmul.f32 %v567, %v557
      %v570 = vlog2.pop %v559
      %v571 = vmul.f32 %v570, 0.6931472
      %v572 = vlog2.pop %v561
      %v573 = vmul.f32 %v572, 0.6931472
      %v574 = vrcp.pop %v571
      %v575 = vmul.f32 %v568, %v574
      %v576 = vrcp.pop %v573
      %v577 = vmul.f32 %v569, %v576
      %v578 = vsel %vm564, -1.0, %v575
      %v579 = vsel %vm565, -1.0, %v577
      %v580 = vsel %vm562, %v556, %v578
      %v581 = vsel %vm563, %v557, %v579
      %vm582 = vcmp.gt.f32.partialorder %v554, 0.0
      %vm583 = vcmp.gt.f32.partialorder %v555, 0.0
      %v584 = vsel %vm582, %v554, %v580
      %v585 = vsel %vm583, %v555, %v581
      %v586 = vld [vmem:[%s3 + $0x2] sm:$0x1]
      %v587 = vlaneseq
      %v588 = vshrl.u32 %v587, 7
      %v589 = vsub.s32 0, %v588
      %v590 = vrot.slane %v586, %v589
      %v591 = vadd.f32 %v546, %v590
      %v592 = vadd.f32 %v548, %v590
      %v593 = vpack.c.bf16 %v585, %v584
      %v594 = vrot.slane %v584, 7
      %v595 = vrot.slane %v585, 7
      %v596 = vsel %vm238, %v594, %v595
      %v597 = vsel %vm238, %v595, %v594
      %v598 = vsel %vm243, 0.0, %v597
      %v599 = vsel %vm244, 0.0, %v596
      %v600 = vpack.c.bf16 %v599, %v598
      %v601 = vrot.slane %v584, 1
      %v602 = vrot.slane %v585, 1
      %v603 = vsel %vm250, %v601, %v602
      %v604 = vsel %vm250, %v602, %v601
      %v605 = vsel %vm255, 0.0, %v603
      %v606 = vsel %vm256, 0.0, %v604
      %v607 = vpack.c.bf16 %v606, %v605
      %v608 = vld [vmem:[%s2] sm:$0xf]
      %v609 = vld [vmem:[%s2 + $0x4] sm:$0xf]
      %v610 = vld [vmem:[%s2 + $0x8] sm:$0xf]
      %v611 = vld [vmem:[%s2 + $0xc] sm:$0xf]
      %v612 = vld [vmem:[%s2 + $0x10] sm:$0xf]
      %v613 = vld [vmem:[%s2 + $0x14] sm:$0xf]
      %v614 = vld [vmem:[%s2 + $0x18] sm:$0xf]
      %v615 = vld [vmem:[%s2 + $0x1c] sm:$0xf]
      %v616 = vld [vmem:[%s2 + $0x20] sm:$0xf]
      %v617 = vld [vmem:[%s2 + $0x24] sm:$0xf]
      %v618 = vld [vmem:[%s2 + $0x28] sm:$0xf]
      %v619 = vld [vmem:[%s2 + $0x2c] sm:$0xf]
      %v620 = vld [vmem:[%s2 + $0x30] sm:$0xf]
      %v621 = vld [vmem:[%s2 + $0x34] sm:$0xf]
      %v622 = vld [vmem:[%s2 + $0x38] sm:$0xf]
      %v623 = vld [vmem:[%s2 + $0x3c] sm:$0xf]
      %s624 = scalar_lea.vmem %s2, 64
      %v625 = vld [vmem:[%s624] sm:$0xf]
      %v626 = vld [vmem:[%s624 + $0x4] sm:$0xf]
      %v627 = vld [vmem:[%s624 + $0x8] sm:$0xf]
      %v628 = vld [vmem:[%s624 + $0xc] sm:$0xf]
      %v629 = vld [vmem:[%s624 + $0x10] sm:$0xf]
      %v630 = vld [vmem:[%s624 + $0x14] sm:$0xf]
      %v631 = vld [vmem:[%s624 + $0x18] sm:$0xf]
      %v632 = vld [vmem:[%s624 + $0x1c] sm:$0xf]
      %v633 = vld [vmem:[%s624 + $0x20] sm:$0xf]
      %v634 = vld [vmem:[%s624 + $0x24] sm:$0xf]
      %v635 = vld [vmem:[%s624 + $0x28] sm:$0xf]
      %v636 = vld [vmem:[%s624 + $0x2c] sm:$0xf]
      %v637 = vld [vmem:[%s624 + $0x30] sm:$0xf]
      %v638 = vld [vmem:[%s624 + $0x34] sm:$0xf]
      %v639 = vld [vmem:[%s624 + $0x38] sm:$0xf]
      %v640 = vld [vmem:[%s624 + $0x3c] sm:$0xf]
      %v657 = vunpack.c.l.b16 %v625
      %v658 = vunpack.c.l.b16 %v626
      %v659 = vunpack.c.l.b16 %v627
      %v660 = vunpack.c.l.b16 %v628
      %v661 = vunpack.c.l.b16 %v629
      %v662 = vunpack.c.l.b16 %v630
      %v663 = vunpack.c.l.b16 %v631
      %v664 = vunpack.c.l.b16 %v632
      %v665 = vunpack.c.l.b16 %v633
      %v666 = vunpack.c.l.b16 %v634
      %v667 = vunpack.c.l.b16 %v635
      %v668 = vunpack.c.l.b16 %v636
      %v669 = vunpack.c.l.b16 %v637
      %v670 = vunpack.c.l.b16 %v638
      %v671 = vunpack.c.l.b16 %v639
      %v672 = vunpack.c.l.b16 %v640
      %v673 = vpack.c.b16 %v658, %v657
      %v674 = vpack.c.b16 %v660, %v659
      %v675 = vpack.c.b16 %v662, %v661
      %v676 = vpack.c.b16 %v664, %v663
      %v677 = vpack.c.b16 %v666, %v665
      %v678 = vpack.c.b16 %v668, %v667
      %v679 = vpack.c.b16 %v670, %v669
      %v680 = vpack.c.b16 %v672, %v671
      %689 = vmatprep.subr.bf16.mxu0 0
      %690 = vmatpush1.bf16.msra.mxu0 %v673
      %691 = vmatprep.subr.bf16.mxu0 0
      %692 = vmatpush1.bf16.msra.mxu0 %v674
      %693 = vmatprep.subr.bf16.mxu0 0
      %694 = vmatpush1.bf16.msra.mxu0 %v675
      %695 = vmatprep.subr.bf16.mxu0 0
      %696 = vmatpush1.bf16.msra.mxu0 %v676
      %697 = vmatprep.subr.bf16.mxu0 0
      %698 = vmatpush1.bf16.msra.mxu0 %v677
      %699 = vmatprep.subr.bf16.mxu0 0
      %700 = vmatpush1.bf16.msra.mxu0 %v678
      %701 = vmatprep.subr.bf16.mxu0 0
      %702 = vmatpush1.bf16.msra.mxu0 %v679
      %703 = vmatprep.subr.bf16.mxu0 0
      %704 = vmatpush1.bf16.msra.mxu0 %v680
      %705 = vmatprep.subr.bf16.mxu0 0
      %706 = vmatpush1.bf16.msra.mxu0 0
      %707 = vmatprep.subr.bf16.mxu0 0
      %708 = vmatpush1.bf16.msra.mxu0 0
      %709 = vmatprep.subr.bf16.mxu0 0
      %710 = vmatpush1.bf16.msra.mxu0 0
      %711 = vmatprep.subr.bf16.mxu0 0
      %712 = vmatpush1.bf16.msra.mxu0 0
      %713 = vmatprep.subr.bf16.mxu0 0
      %714 = vmatpush1.bf16.msra.mxu0 0
      %715 = vmatprep.subr.bf16.mxu0 0
      %716 = vmatpush1.bf16.msra.mxu0 0
      %717 = vmatprep.subr.bf16.mxu0 0
      %718 = vmatpush1.bf16.msra.mxu0 0
      %719 = vmatprep.subr.bf16.mxu0 0
      %720 = vmatpush1.bf16.msra.mxu0 0
      %721 = vmatprep.mubr.bf16.mxu0 0
      %722 = vmatmul.mubr.bf16.gmra.mrb[0].mxu0 %v593
      %v723 = vpop.f32.mrb[0].mxu0
      %v724 = vadd.f32 0.0, %v723
      %v725 = vpop.f32.mrb[0].mxu0
      %v726 = vpop.f32.mrb[0].mxu0
      %v727 = vadd.f32 0.0, %v726
      %v728 = vpop.f32.mrb[0].mxu0
      %729 = vdwg.mxu0
      %v746 = vunpack.c.l.b16 %v608
      %v747 = vunpack.c.l.b16 %v609
      %v748 = vunpack.c.l.b16 %v610
      %v749 = vunpack.c.l.b16 %v611
      %v750 = vunpack.c.l.b16 %v612
      %v751 = vunpack.c.l.b16 %v613
      %v752 = vunpack.c.l.b16 %v614
      %v753 = vunpack.c.l.b16 %v615
      %v754 = vunpack.c.l.b16 %v616
      %v755 = vunpack.c.l.b16 %v617
      %v756 = vunpack.c.l.b16 %v618
      %v757 = vunpack.c.l.b16 %v619
      %v758 = vunpack.c.l.b16 %v620
      %v759 = vunpack.c.l.b16 %v621
      %v760 = vunpack.c.l.b16 %v622
      %v761 = vunpack.c.l.b16 %v623
      %v762 = vpack.c.b16 %v747, %v746
      %v763 = vpack.c.b16 %v749, %v748
      %v764 = vpack.c.b16 %v751, %v750
      %v765 = vpack.c.b16 %v753, %v752
      %v766 = vpack.c.b16 %v755, %v754
      %v767 = vpack.c.b16 %v757, %v756
      %v768 = vpack.c.b16 %v759, %v758
      %v769 = vpack.c.b16 %v761, %v760
      %778 = vmatprep.subr.bf16.mxu0 0
      %779 = vmatpush1.bf16.msra.mxu0 %v762
      %780 = vmatprep.subr.bf16.mxu0 0
      %781 = vmatpush1.bf16.msra.mxu0 %v763
      %782 = vmatprep.subr.bf16.mxu0 0
      %783 = vmatpush1.bf16.msra.mxu0 %v764
      %784 = vmatprep.subr.bf16.mxu0 0
      %785 = vmatpush1.bf16.msra.mxu0 %v765
      %786 = vmatprep.subr.bf16.mxu0 0
      %787 = vmatpush1.bf16.msra.mxu0 %v766
      %788 = vmatprep.subr.bf16.mxu0 0
      %789 = vmatpush1.bf16.msra.mxu0 %v767
      %790 = vmatprep.subr.bf16.mxu0 0
      %791 = vmatpush1.bf16.msra.mxu0 %v768
      %792 = vmatprep.subr.bf16.mxu0 0
      %793 = vmatpush1.bf16.msra.mxu0 %v769
      %794 = vmatprep.subr.bf16.mxu0 0
      %795 = vmatpush1.bf16.msra.mxu0 0
      %796 = vmatprep.subr.bf16.mxu0 0
      %797 = vmatpush1.bf16.msra.mxu0 0
      %798 = vmatprep.subr.bf16.mxu0 0
      %799 = vmatpush1.bf16.msra.mxu0 0
      %800 = vmatprep.subr.bf16.mxu0 0
      %801 = vmatpush1.bf16.msra.mxu0 0
      %802 = vmatprep.subr.bf16.mxu0 0
      %803 = vmatpush1.bf16.msra.mxu0 0
      %804 = vmatprep.subr.bf16.mxu0 0
      %805 = vmatpush1.bf16.msra.mxu0 0
      %806 = vmatprep.subr.bf16.mxu0 0
      %807 = vmatpush1.bf16.msra.mxu0 0
      %808 = vmatprep.subr.bf16.mxu0 0
      %809 = vmatpush1.bf16.msra.mxu0 0
      %810 = vmatprep.mubr.bf16.mxu0 0
      %811 = vmatmul.mubr.bf16.gmra.mrb[0].mxu0 %v600
      %v812 = vpop.f32.mrb[0].mxu0
      %v813 = vadd.f32 %v724, %v812
      %v814 = vpop.f32.mrb[0].mxu0
      %v815 = vpop.f32.mrb[0].mxu0
      %v816 = vadd.f32 %v727, %v815
      %v817 = vpop.f32.mrb[0].mxu0
      %818 = vdwg.mxu0
      %s819 = scalar_lea.vmem %s2, 128
      %v820 = vld [vmem:[%s819] sm:$0xf]
      %v821 = vld [vmem:[%s819 + $0x4] sm:$0xf]
      %v822 = vld [vmem:[%s819 + $0x8] sm:$0xf]
      %v823 = vld [vmem:[%s819 + $0xc] sm:$0xf]
      %v824 = vld [vmem:[%s819 + $0x10] sm:$0xf]
      %v825 = vld [vmem:[%s819 + $0x14] sm:$0xf]
      %v826 = vld [vmem:[%s819 + $0x18] sm:$0xf]
      %v827 = vld [vmem:[%s819 + $0x1c] sm:$0xf]
      %v828 = vld [vmem:[%s819 + $0x20] sm:$0xf]
      %v829 = vld [vmem:[%s819 + $0x24] sm:$0xf]
      %v830 = vld [vmem:[%s819 + $0x28] sm:$0xf]
      %v831 = vld [vmem:[%s819 + $0x2c] sm:$0xf]
      %v832 = vld [vmem:[%s819 + $0x30] sm:$0xf]
      %v833 = vld [vmem:[%s819 + $0x34] sm:$0xf]
      %v834 = vld [vmem:[%s819 + $0x38] sm:$0xf]
      %v835 = vld [vmem:[%s819 + $0x3c] sm:$0xf]
      %v852 = vunpack.c.l.b16 %v820
      %v853 = vunpack.c.l.b16 %v821
      %v854 = vunpack.c.l.b16 %v822
      %v855 = vunpack.c.l.b16 %v823
      %v856 = vunpack.c.l.b16 %v824
      %v857 = vunpack.c.l.b16 %v825
      %v858 = vunpack.c.l.b16 %v826
      %v859 = vunpack.c.l.b16 %v827
      %v860 = vunpack.c.l.b16 %v828
      %v861 = vunpack.c.l.b16 %v829
      %v862 = vunpack.c.l.b16 %v830
      %v863 = vunpack.c.l.b16 %v831
      %v864 = vunpack.c.l.b16 %v832
      %v865 = vunpack.c.l.b16 %v833
      %v866 = vunpack.c.l.b16 %v834
      %v867 = vunpack.c.l.b16 %v835
      %v868 = vpack.c.b16 %v853, %v852
      %v869 = vpack.c.b16 %v855, %v854
      %v870 = vpack.c.b16 %v857, %v856
      %v871 = vpack.c.b16 %v859, %v858
      %v872 = vpack.c.b16 %v861, %v860
      %v873 = vpack.c.b16 %v863, %v862
      %v874 = vpack.c.b16 %v865, %v864
      %v875 = vpack.c.b16 %v867, %v866
      %884 = vmatprep.subr.bf16.mxu0 0
      %885 = vmatpush1.bf16.msra.mxu0 %v868
      %886 = vmatprep.subr.bf16.mxu0 0
      %887 = vmatpush1.bf16.msra.mxu0 %v869
      %888 = vmatprep.subr.bf16.mxu0 0
      %889 = vmatpush1.bf16.msra.mxu0 %v870
      %890 = vmatprep.subr.bf16.mxu0 0
      %891 = vmatpush1.bf16.msra.mxu0 %v871
      %892 = vmatprep.subr.bf16.mxu0 0
      %893 = vmatpush1.bf16.msra.mxu0 %v872
      %894 = vmatprep.subr.bf16.mxu0 0
      %895 = vmatpush1.bf16.msra.mxu0 %v873
      %896 = vmatprep.subr.bf16.mxu0 0
      %897 = vmatpush1.bf16.msra.mxu0 %v874
      %898 = vmatprep.subr.bf16.mxu0 0
      %899 = vmatpush1.bf16.msra.mxu0 %v875
      %900 = vmatprep.subr.bf16.mxu0 0
      %901 = vmatpush1.bf16.msra.mxu0 0
      %902 = vmatprep.subr.bf16.mxu0 0
      %903 = vmatpush1.bf16.msra.mxu0 0
      %904 = vmatprep.subr.bf16.mxu0 0
      %905 = vmatpush1.bf16.msra.mxu0 0
      %906 = vmatprep.subr.bf16.mxu0 0
      %907 = vmatpush1.bf16.msra.mxu0 0
      %908 = vmatprep.subr.bf16.mxu0 0
      %909 = vmatpush1.bf16.msra.mxu0 0
      %910 = vmatprep.subr.bf16.mxu0 0
      %911 = vmatpush1.bf16.msra.mxu0 0
      %912 = vmatprep.subr.bf16.mxu0 0
      %913 = vmatpush1.bf16.msra.mxu0 0
      %914 = vmatprep.subr.bf16.mxu0 0
      %915 = vmatpush1.bf16.msra.mxu0 0
      %916 = vmatprep.mubr.bf16.mxu0 0
      %917 = vmatmul.mubr.bf16.gmra.mrb[0].mxu0 %v607
      %v918 = vpop.f32.mrb[0].mxu0
      %v919 = vadd.f32 0.0, %v918
      %v920 = vpop.f32.mrb[0].mxu0
      %v921 = vpop.f32.mrb[0].mxu0
      %v922 = vadd.f32 0.0, %v921
      %v923 = vpop.f32.mrb[0].mxu0
      %924 = vdwg.mxu0
      %v925 = vadd.f32 %v813, %v919
      %v926 = vadd.f32 %v816, %v922
      %v927 = vld [vmem:[%s3 + $0x1] sm:$0x1]
      %v928 = vlaneseq
      %v929 = vshrl.u32 %v928, 7
      %v930 = vsub.s32 0, %v929
      %v931 = vrot.slane %v927, %v930
      %v932 = vadd.f32 %v925, %v931
      %v933 = vadd.f32 %v926, %v931
      %v934 = vmin.f32 %v932, 0.0
      %v935 = vmin.f32 %v933, 0.0
      %v936 = vmul.f32 %v934, 1.442695
      %v937 = vpow.pop %v936
      %v938 = vmul.f32 %v935, 1.442695
      %v939 = vpow.pop %v938
      %vm940 = vcmp.eq.f32.partialorder %v937, 1.0
      %vm941 = vcmp.eq.f32.partialorder %v939, 1.0
      %vm942 = vcmp.eq.f32.partialorder %v937, 0.0
      %vm943 = vcmp.eq.f32.partialorder %v939, 0.0
      %v944 = vsub.f32 %v937, 1.0
      %v945 = vsub.f32 %v939, 1.0
      %v946 = vmul.f32 %v944, %v934
      %v947 = vmul.f32 %v945, %v935
      %v948 = vlog2.pop %v937
      %v949 = vmul.f32 %v948, 0.6931472
      %v950 = vlog2.pop %v939
      %v951 = vmul.f32 %v950, 0.6931472
      %v952 = vrcp.pop %v949
      %v953 = vmul.f32 %v946, %v952
      %v954 = vrcp.pop %v951
      %v955 = vmul.f32 %v947, %v954
      %v956 = vsel %vm942, -1.0, %v953
      %v957 = vsel %vm943, -1.0, %v955
      %v958 = vsel %vm940, %v934, %v956
      %v959 = vsel %vm941, %v935, %v957
      %vm960 = vcmp.gt.f32.partialorder %v932, 0.0
      %vm961 = vcmp.gt.f32.partialorder %v933, 0.0
      %v962 = vsel %vm960, %v932, %v958
      %v963 = vsel %vm961, %v933, %v959
      %v964 = vadd.f32 %v962, %v591
      %v965 = vadd.f32 %v963, %v592
      %v966 = vmin.f32 %v964, 0.0
      %v967 = vmin.f32 %v965, 0.0
      %v968 = vmul.f32 %v966, 1.442695
      %v969 = vpow.pop %v968
      %v970 = vmul.f32 %v967, 1.442695
      %v971 = vpow.pop %v970
      %vm972 = vcmp.eq.f32.partialorder %v969, 1.0
      %vm973 = vcmp.eq.f32.partialorder %v971, 1.0
      %vm974 = vcmp.eq.f32.partialorder %v969, 0.0
      %vm975 = vcmp.eq.f32.partialorder %v971, 0.0
      %v976 = vsub.f32 %v969, 1.0
      %v977 = vsub.f32 %v971, 1.0
      %v978 = vmul.f32 %v976, %v966
      %v979 = vmul.f32 %v977, %v967
      %v980 = vlog2.pop %v969
      %v981 = vmul.f32 %v980, 0.6931472
      %v982 = vlog2.pop %v971
      %v983 = vmul.f32 %v982, 0.6931472
      %v984 = vrcp.pop %v981
      %v985 = vmul.f32 %v978, %v984
      %v986 = vrcp.pop %v983
      %v987 = vmul.f32 %v979, %v986
      %v988 = vsel %vm974, -1.0, %v985
      %v989 = vsel %vm975, -1.0, %v987
      %v990 = vsel %vm972, %v966, %v988
      %v991 = vsel %vm973, %v967, %v989
      %vm992 = vcmp.gt.f32.partialorder %v964, 0.0
      %vm993 = vcmp.gt.f32.partialorder %v965, 0.0
      %v994 = vsel %vm992, %v964, %v990
      %v995 = vsel %vm993, %v965, %v991
      %996 = vst [vmem:[%s199] sm:$0xff] %v994
      %997 = vst [vmem:[%s199 + $0x8] sm:$0xff] %v995
      %s998 = smul.u32 2, %s15
      %p999 = scmp.lt.s32.totalorder %s998, 3
      %s1000 = scalar_select %p999, %s998, 3
      %s1001 = smul.addr %s1000, 8
      %s1002 = scalar_lea.vmem %s4, %s1001
      // Predicated region
      $region37: #{_res_conv_basic_impl.1} parent=35 // pred_check
        %p1003 = pneg %p122
      $region38: #{_res_conv_basic_impl.1} parent=35 // pred_check_branch
        %1005 = sbr.rel (%p1003) target = $region40
      $region39: #{_res_conv_basic_impl.1} parent=35 // pred_region
        %s1006 = smul.u32 2, %s15
      $region40: #{_res_conv_basic_impl.1} parent=35 // pred_fallthru
        _
    $region36: #{_res_conv_basic_impl.1} parent=5 // pred_fallthru
      _
    %p1007 = scmp.le.s32.totalorder 2, %s10
    // Predicated region
    $region41: #{_res_conv_basic_impl.1} parent=5 // pred_check
      %p1008 = pneg %p1007
    $region42: #{_res_conv_basic_impl.1} parent=5 // pred_check_branch
      %1010 = sbr.rel (%p1008) target = $region44
    $region43: #{_res_conv_basic_impl.1} parent=5 // pred_region
      %s1011 = ssub.s32 %s10, 2
      // Predicated region
      $region45: #{_res_conv_basic_impl.1} parent=43 // pred_check
        %p1012 = pneg %p128
      $region46: #{_res_conv_basic_impl.1} parent=43 // pred_check_branch
        %1014 = sbr.rel (%p1012) target = $region48
      $region47: #{_res_conv_basic_impl.1} parent=43 // pred_region
        %s1015 = smul.u32 2, %s16
        %p1016 = scmp.lt.s32.totalorder %s1015, 3
        %s1017 = scalar_select %p1016, %s1015, 3
        %s1018 = smul.addr %s1017, 8
        %s1019 = scalar_lea.vmem %s4, %s1018
      $region48: #{_res_conv_basic_impl.1} parent=43 // pred_fallthru
        _
    $region44: #{_res_conv_basic_impl.1} parent=5 // pred_fallthru
      _
  $region6: #{_res_conv_basic_impl.1} parent=0 // loop_footer
    %s14 = sadd.s32 1, %s10
  $region7: #{_res_conv_basic_impl.1} parent=0 // loop_footer_branch
    %9 = sbr.rel target = $region3
  $region8: #{_res_conv_basic_impl.1} parent=0 // loop_exit
    _

</llo_original>
